<compile_context>
chip_gen: v6e
topology: v6e:2x2x1
jax: 0.10.0
libtpu: 0.0.40
codegen_flags: <defaults>
</compile_context>

<pallas_src>
import jax
import jax.numpy as jnp
from jax.experimental import pallas as pl
from jax.experimental.pallas import tpu as pltpu


def _make_kernel(has_bias: bool, acc_is_output: bool):
    """Builds the grid kernel.

    Ref order: x, w, [bias], out, [acc scratch].
    acc_is_output=True  -> output dtype is f32; accumulate directly into o_ref
                           (output block is resident across the K axis).
    acc_is_output=False -> f32 VMEM scratch accumulator, cast on the last step.
    """

    def kernel(*refs):
        if has_bias:
            x_ref, w_ref, b_ref = refs[0], refs[1], refs[2]
            rest = refs[3:]
        else:
            x_ref, w_ref = refs[0], refs[1]
            b_ref = None
            rest = refs[2:]
        if acc_is_output:
            (o_ref,) = rest
            acc_ref = o_ref
        else:
            o_ref, acc_ref = rest

        k = pl.program_id(2)
        nk = pl.num_programs(2)

        # x: (tm, tk), w: (tn, tk) -> contract last dims of both: (tm, tn).
        # Weight stays in its tied (N, K) layout; no in-kernel transpose.
        prod = jax.lax.dot_general(
            x_ref[...],
            w_ref[...],
            dimension_numbers=(((1,), (1,)), ((), ())),
            preferred_element_type=jnp.float32,
        )

        @pl.when(k == 0)
        def _():
            acc_ref[...] = prod

        @pl.when(k > 0)
        def _():
            acc_ref[...] += prod

        # Finalize only if there is something left to do (bias add / cast).
        if has_bias or not acc_is_output:
            @pl.when(k == nk - 1)
            def _():
                res = acc_ref[...]
                if has_bias:
                    res = res + b_ref[...].astype(jnp.float32)
                o_ref[...] = res.astype(o_ref.dtype)

    return kernel


def _round_up(a, b):
    return ((a + b - 1) // b) * b


def _choose_k_tiling(K, tk_target):
    """Pick (tk, padded_K) such that tk divides padded_K exactly and the
    per-tile footprint stays bounded (no whole-K fallback for awkward K)."""
    if K <= tk_target:
        return K, K
    # Prefer a 256-aligned divisor (MXU-friendly on v6e/v7x), then 128.
    for align in (256, 128):
        start = (tk_target // align) * align
        for cand in range(start, 0, -align):
            if K % cand == 0:
                return cand, K
    # No lane-aligned divisor: zero-pad K once; zeros add nothing to the dot.
    tk = max(256, (tk_target // 256) * 256)
    return tk, _round_up(K, tk)


def tied_projection(x, weight, bias=None, *, tm=512, tn=512, tk=None):
    """Pallas implementation of F.linear(x, weight, bias) with a tied weight.

    The weight is consumed in its native (output_dim, input_dim) layout --
    no transpose / re-layout pass over the (possibly vocab-sized) weight.
    """
    N, K = weight.shape
    orig_shape = x.shape
    assert orig_shape[-1] == K, "last dim of x must equal input_dim"

    M = 1
    for d in orig_shape[:-1]:
        M *= d
    x2d = x.reshape(M, K)

    # bf16 MXU path when either operand is bf16; f32 accumulation is kept via
    # preferred_element_type inside the kernel.
    bf16 = jnp.dtype(jnp.bfloat16)
    x_dt, w_dt = jnp.dtype(x.dtype), jnp.dtype(weight.dtype)
    if x_dt == bf16 or w_dt == bf16:
        compute_dtype = jnp.bfloat16
    else:
        compute_dtype = jnp.promote_types(x_dt, w_dt)
    out_dtype = jnp.result_type(x_dt, w_dt)

    # Lane-dense output: tiny output dims get padded once to a full 128-lane
    # tile (unmasked vst), then sliced back.
    # TODO(synk): for a real tied head, hoist N-padding / dtype casts to where
    # the shared weight is created so they are amortized across calls.
    N_pad = _round_up(N, 128) if N < 128 else N

    if tk is None:
        tk = 2048 if jnp.dtype(compute_dtype).itemsize <= 2 else 1024
    tk, K_pad = _choose_k_tiling(K, tk)

    x2d = x2d.astype(compute_dtype)
    w = weight.astype(compute_dtype)
    if K_pad != K:
        x2d = jnp.pad(x2d, ((0, 0), (0, K_pad - K)))
        w = jnp.pad(w, ((0, 0), (0, K_pad - K)))
    if N_pad != N:
        w = jnp.pad(w, ((0, N_pad - N), (0, 0)))

    b2d = None
    if bias is not None:
        b2d = bias.reshape(1, N)
        if N_pad != N:
            b2d = jnp.pad(b2d, ((0, 0), (0, N_pad - N)))

    tm = min(tm, M)
    tn = min(tn, N_pad)
    # Megacore (v7x has 2 TensorCores): ensure >=2 blocks along a parallel
    # axis even for small-M (decode) shapes, so one core does not idle.
    if pl.cdiv(M, tm) == 1 and pl.cdiv(N_pad, tn) == 1 and N_pad >= 256:
        tn = _round_up(pl.cdiv(N_pad, 2), 128)

    grid = (pl.cdiv(M, tm), pl.cdiv(N_pad, tn), K_pad // tk)

    in_specs = [
        pl.BlockSpec((tm, tk), lambda i, j, k: (i, k)),   # x tile
        pl.BlockSpec((tn, tk), lambda i, j, k: (j, k)),   # weight tile, (N, K) layout
    ]
    args = [x2d, w]
    if b2d is not None:
        in_specs.append(pl.BlockSpec((1, tn), lambda i, j, k: (0, j)))
        args.append(b2d)

    acc_is_output = jnp.dtype(out_dtype) == jnp.dtype(jnp.float32)
    kernel = _make_kernel(has_bias=bias is not None, acc_is_output=acc_is_output)
    scratch_shapes = [] if acc_is_output else [pltpu.VMEM((tm, tn), jnp.float32)]

    comp_bytes = jnp.dtype(compute_dtype).itemsize
    out_bytes = jnp.dtype(out_dtype).itemsize
    n_i, n_j = pl.cdiv(M, tm), pl.cdiv(N_pad, tn)

    # Truthful HBM traffic: x is re-read once per output-column block, the
    # weight once per output-row block.
    cost = pl.CostEstimate(
        flops=2 * M * N_pad * K_pad,
        transcendentals=0,
        bytes_accessed=(
            M * K_pad * comp_bytes * n_j
            + N_pad * K_pad * comp_bytes * n_i
            + M * N_pad * out_bytes
            + (N_pad * jnp.dtype(b2d.dtype).itemsize if b2d is not None else 0)
        ),
    )

    # Footprint-derived scoped-VMEM limit, capped for v7x's 64 MiB per-TC VMEM.
    footprint = (
        2 * tm * tk * comp_bytes                      # double-buffered x tile
        + 2 * tn * tk * comp_bytes                    # double-buffered weight tile
        + 2 * tm * tn * out_bytes                     # double-buffered out tile
        + (0 if acc_is_output else tm * tn * 4)       # f32 accumulator scratch
        + (2 * tn * 4 if b2d is not None else 0)
    )
    vmem_limit = int(min(64 * 1024 * 1024, max(32 * 1024 * 1024, 2 * footprint)))

    out2d = pl.pallas_call(
        kernel,
        out_shape=jax.ShapeDtypeStruct((M, N_pad), out_dtype),
        grid_spec=pltpu.PrefetchScalarGridSpec(
            num_scalar_prefetch=0,
            grid=grid,
            in_specs=in_specs,
            out_specs=pl.BlockSpec((tm, tn), lambda i, j, k: (i, j)),
            scratch_shapes=scratch_shapes,
        ),
        compiler_params=pltpu.CompilerParams(
            dimension_semantics=("parallel", "parallel", "arbitrary"),
            vmem_limit_bytes=vmem_limit,
        ),
        cost_estimate=cost,
    )(*args)

    if N_pad != N:
        out2d = out2d[:, :N]
    return out2d.reshape(*orig_shape[:-1], N)


if __name__ == "__main__":
    key = jax.random.PRNGKey(0)
    k_x, k_w, k_b, k_x2, k_w2, k_b2 = jax.random.split(key, 6)

    batch, seq = 2, 8

    # --- Test 1: module-implied small shapes, f32 (direct-output accumulation)
    input_dim, output_dim = 32, 64   # weight: (out, in), bias: (out,)
    weight = jax.random.normal(k_w, (output_dim, input_dim), jnp.float32) * 0.02
    bias = jax.random.normal(k_b, (output_dim,), jnp.float32) * 0.01
    x = jax.random.normal(k_x, (batch, seq, input_dim), jnp.float32)

    y = jax.block_until_ready(tied_projection(x, weight, bias))
    y_ref = x @ weight.T + bias
    assert y.shape == (batch, seq, output_dim)
    assert y.dtype == y_ref.dtype
    assert jnp.allclose(y, y_ref, atol=1e-5, rtol=1e-5)

    y0 = jax.block_until_ready(tied_projection(x, weight, None))
    assert jnp.allclose(y0, x @ weight.T, atol=1e-5, rtol=1e-5)

    # --- Test 2: bf16 tied head, multi-step K reduction (scratch-acc path) ---
    in2, out2 = 256, 192
    w2 = (jax.random.normal(k_w2, (out2, in2), jnp.float32) * 0.02).astype(jnp.bfloat16)
    b2 = (jax.random.normal(k_b2, (out2,), jnp.float32) * 0.01).astype(jnp.bfloat16)
    x2 = jax.random.normal(k_x2, (batch, seq, in2), jnp.float32).astype(jnp.bfloat16)

    y2 = jax.block_until_ready(tied_projection(x2, w2, b2, tk=128))  # 2 K steps
    y2_ref = (
        x2.astype(jnp.float32) @ w2.astype(jnp.float32).T + b2.astype(jnp.float32)
    ).astype(jnp.bfloat16)
    assert y2.shape == (batch, seq, out2)
    assert y2.dtype == jnp.bfloat16
    assert jnp.allclose(
        y2.astype(jnp.float32), y2_ref.astype(jnp.float32), atol=2e-2, rtol=2e-2
    )

    print("KERNEL_OK")
</pallas_src>

<mosaic_0001>
module attributes {stable_mosaic.version = 11 : i64} {
  func.func @kernel(%arg0: i32, %arg1: i32, %arg2: i32, %arg3: memref<16x32xf32, #tpu.memory_space<vmem>>, %arg4: memref<128x32xf32, #tpu.memory_space<vmem>>, %arg5: memref<1x128xf32, #tpu.memory_space<vmem>>, %arg6: memref<16x128xf32, #tpu.memory_space<vmem>>) attributes {dimension_semantics = [#tpu.dimension_semantics<parallel>, #tpu.dimension_semantics<parallel>, #tpu.dimension_semantics<arbitrary>], iteration_bounds = array<i64: 1, 1, 1>, scalar_prefetch = 0 : i64, scratch_operands = 0 : i64, tpu.core_type = #tpu.core_type<tc>, window_params = [{transform_indices = @transform_0, window_bounds = array<i64: 16, 32>}, {transform_indices = @transform_1, window_bounds = array<i64: 128, 32>}, {transform_indices = @transform_2, window_bounds = array<i64: 1, 128>}, {transform_indices = @transform_3, window_bounds = array<i64: 16, 128>}]} {
    %c0 = arith.constant 0 : index
    %c0_0 = arith.constant 0 : index
    %0 = vector.load %arg3[%c0, %c0_0] : memref<16x32xf32, #tpu.memory_space<vmem>>, vector<16x32xf32>
    %c0_1 = arith.constant 0 : index
    %c0_2 = arith.constant 0 : index
    %1 = vector.load %arg4[%c0_1, %c0_2] : memref<128x32xf32, #tpu.memory_space<vmem>>, vector<128x32xf32>
    %cst = arith.constant dense<0.000000e+00> : vector<16x128xf32>
    %2 = tpu.matmul %0, %1, %cst {dimension_numbers = #tpu.dot_dimension_numbers<[1], [1], [0], [0], [0, 0, 1, 0], [], []>} : vector<16x32xf32>, vector<128x32xf32>, vector<16x128xf32> -> vector<16x128xf32>
    %c0_i32 = arith.constant 0 : i32
    %3 = arith.cmpi eq, %arg2, %c0_i32 : i32
    %4 = arith.extui %3 : i1 to i32
    %c0_i32_3 = arith.constant 0 : i32
    %5 = arith.cmpi ne, %4, %c0_i32_3 : i32
    scf.if %5 {
      %c0_8 = arith.constant 0 : index
      %c0_9 = arith.constant 0 : index
      %12 = vector.load %arg6[%c0_8, %c0_9] : memref<16x128xf32, #tpu.memory_space<vmem>>, vector<16x128xf32>
      tpu.vector_store %arg6[%c0_8, %c0_9], %2 {strides = array<i32>} : memref<16x128xf32, #tpu.memory_space<vmem>>, vector<16x128xf32>,
    } else {
    }
    %c0_i32_4 = arith.constant 0 : i32
    %6 = arith.cmpi sgt, %arg2, %c0_i32_4 : i32
    %7 = arith.extui %6 : i1 to i32
    %c0_i32_5 = arith.constant 0 : i32
    %8 = arith.cmpi ne, %7, %c0_i32_5 : i32
    scf.if %8 {
      %c0_8 = arith.constant 0 : index
      %c0_9 = arith.constant 0 : index
      %12 = vector.load %arg6[%c0_8, %c0_9] : memref<16x128xf32, #tpu.memory_space<vmem>>, vector<16x128xf32>
      %13 = arith.addf %12, %2 : vector<16x128xf32>
      %c0_10 = arith.constant 0 : index
      %c0_11 = arith.constant 0 : index
      %14 = vector.load %arg6[%c0_10, %c0_11] : memref<16x128xf32, #tpu.memory_space<vmem>>, vector<16x128xf32>
      tpu.vector_store %arg6[%c0_10, %c0_11], %13 {strides = array<i32>} : memref<16x128xf32, #tpu.memory_space<vmem>>, vector<16x128xf32>,
    } else {
    }
    %c0_i32_6 = arith.constant 0 : i32
    %9 = arith.cmpi eq, %arg2, %c0_i32_6 : i32
    %10 = arith.extui %9 : i1 to i32
    %c0_i32_7 = arith.constant 0 : i32
    %11 = arith.cmpi ne, %10, %c0_i32_7 : i32
    scf.if %11 {
      %c0_8 = arith.constant 0 : index
      %c0_9 = arith.constant 0 : index
      %12 = vector.load %arg6[%c0_8, %c0_9] : memref<16x128xf32, #tpu.memory_space<vmem>>, vector<16x128xf32>
      %c0_10 = arith.constant 0 : index
      %c0_11 = arith.constant 0 : index
      %13 = vector.load %arg5[%c0_10, %c0_11] : memref<1x128xf32, #tpu.memory_space<vmem>>, vector<1x128xf32>
      %14 = vector.broadcast %13 : vector<1x128xf32> to vector<16x128xf32>
      %15 = arith.addf %12, %14 : vector<16x128xf32>
      %c0_12 = arith.constant 0 : index
      %c0_13 = arith.constant 0 : index
      %16 = vector.load %arg6[%c0_12, %c0_13] : memref<16x128xf32, #tpu.memory_space<vmem>>, vector<16x128xf32>
      tpu.vector_store %arg6[%c0_12, %c0_13], %15 {strides = array<i32>} : memref<16x128xf32, #tpu.memory_space<vmem>>, vector<16x128xf32>,
    } else {
    }
    return
  }
  func.func @transform_0(%arg0: i32, %arg1: i32, %arg2: i32) -> (i32, i32) {
    %c0_i32 = arith.constant 0 : i32
    return %arg0, %arg2 : i32, i32
  }
  func.func @transform_1(%arg0: i32, %arg1: i32, %arg2: i32) -> (i32, i32) {
    %c0_i32 = arith.constant 0 : i32
    return %arg1, %arg2 : i32, i32
  }
  func.func @transform_2(%arg0: i32, %arg1: i32, %arg2: i32) -> (i32, i32) {
    %c0_i32 = arith.constant 0 : i32
    %c0_i32_0 = arith.constant 0 : i32
    return %c0_i32, %arg1 : i32, i32
  }
  func.func @transform_3(%arg0: i32, %arg1: i32, %arg2: i32) -> (i32, i32) {
    %c0_i32 = arith.constant 0 : i32
    return %arg0, %arg1 : i32, i32
  }
}

</mosaic_0001>

<llo_original>
// kernel: tpu_custom_call.1
$region0: #{tpu_custom_call.1}
  #allocation0 [shape = 'u32[]', space=smem, size = 0x4, offset = 0x4, fixed_abs, tag = 'smem constant byte address 0x4 - core index']
  #allocation1 [shape = 'u32[144,128]{1,0:T(1,128)}', space=vmem, size = 0x12000, scoped, tag = 'internal scratch']
  %s0 = inlined_call_operand.vmem [shape: f32[16,32], index: 0, kind: input, shape index: {}]
  %s1 = inlined_call_operand.vmem [shape: f32[128,32], index: 1, kind: input, shape index: {}]
  %s2 = inlined_call_operand.vmem [shape: f32[1,128], index: 2, kind: input, shape index: {}]
  %s3 = inlined_call_operand.hbm [shape: f32[16,128], index: 3, kind: output, shape index: {}]
  %s4 = sld [smem:[#allocation0]]
  $region34: #{tpu_custom_call.1} parent=0
    _
  %s6 = ssub.s32 1, %s4
  %s7 = scalar_select 0, %s6, %s4
  $region1: #{tpu_custom_call.1} parent=0
    #allocation2 [shape = 'u8[8192]{0}', space=vmem, size = 0x2000, scoped, tag = 'output window, operand 0, single buffered']
    #allocation3 [shape = 's32[1]{0}', space=sflag, size = 0x4, scoped, tag = 'scoped memory for tpu_custom_call.1']
    %8 = vsyncpa [#allocation3], 0
    // Predicated region
    $region2: #{tpu_custom_call.1} parent=1 // pred_check
      _
    $region3: #{tpu_custom_call.1} parent=1 // pred_check_branch
      %10 = sbr.rel (0) target = $region5
    $region4: #{tpu_custom_call.1} parent=1 // pred_region
      _
    $region5: #{tpu_custom_call.1} parent=1 // pred_fallthru
      _
    // Predicated region
    $region6: #{tpu_custom_call.1} parent=1 // pred_check
      _
    $region7: #{tpu_custom_call.1} parent=1 // pred_check_branch
      %12 = sbr.rel (0) target = $region9
    $region8: #{tpu_custom_call.1} parent=1 // pred_region
      _
    $region9: #{tpu_custom_call.1} parent=1 // pred_fallthru
      _
    // Predicated region
    $region10: #{tpu_custom_call.1} parent=1 // pred_check
      _
    $region11: #{tpu_custom_call.1} parent=1 // pred_check_branch
      %14 = sbr.rel (0) target = $region13
    $region12: #{tpu_custom_call.1} parent=1 // pred_region
      _
    $region13: #{tpu_custom_call.1} parent=1 // pred_fallthru
      _
    %v15 = vld [vmem:[%s0] sm:$0xff]
    %v16 = vld [vmem:[%s0 + $0x8] sm:$0xff]
    %v17 = vld [vmem:[%s1] sm:$0xff]
    %v18 = vld [vmem:[%s1 + $0x8] sm:$0xff]
    %v19 = vld [vmem:[%s1 + $0x10] sm:$0xff]
    %v20 = vld [vmem:[%s1 + $0x18] sm:$0xff]
    %v21 = vld [vmem:[%s1 + $0x20] sm:$0xff]
    %v22 = vld [vmem:[%s1 + $0x28] sm:$0xff]
    %v23 = vld [vmem:[%s1 + $0x30] sm:$0xff]
    %v24 = vld [vmem:[%s1 + $0x38] sm:$0xff]
    %v25 = vld [vmem:[%s1 + $0x40] sm:$0xff]
    %v26 = vld [vmem:[%s1 + $0x48] sm:$0xff]
    %v27 = vld [vmem:[%s1 + $0x50] sm:$0xff]
    %v28 = vld [vmem:[%s1 + $0x58] sm:$0xff]
    %v29 = vld [vmem:[%s1 + $0x60] sm:$0xff]
    %v30 = vld [vmem:[%s1 + $0x68] sm:$0xff]
    %v31 = vld [vmem:[%s1 + $0x70] sm:$0xff]
    %v32 = vld [vmem:[%s1 + $0x78] sm:$0xff]
    %vm33 = vcmask 261120
    %v35 = vsel %vm33, %v15, 0
    %v38 = vsel %vm33, %v16, 0
    %v41 = vsel %vm33, %v17, 0
    %v44 = vsel %vm33, %v18, 0
    %v47 = vsel %vm33, %v19, 0
    %v50 = vsel %vm33, %v20, 0
    %v53 = vsel %vm33, %v21, 0
    %v56 = vsel %vm33, %v22, 0
    %v59 = vsel %vm33, %v23, 0
    %v62 = vsel %vm33, %v24, 0
    %v65 = vsel %vm33, %v25, 0
    %v68 = vsel %vm33, %v26, 0
    %v71 = vsel %vm33, %v27, 0
    %v74 = vsel %vm33, %v28, 0
    %v77 = vsel %vm33, %v29, 0
    %v80 = vsel %vm33, %v30, 0
    %v83 = vsel %vm33, %v31, 0
    %v86 = vsel %vm33, %v32, 0
    %88 = vmatprep.subr.mxu0 0.0
    %89 = vmatpush1.xpose.msra.mxu0 %v86
    %90 = vmatprep.subr.mxu0 0.0
    %91 = vmatpush1.xpose.msra.mxu0 %v83
    %92 = vmatprep.subr.mxu0 0.0
    %93 = vmatpush1.xpose.msra.mxu0 %v80
    %94 = vmatprep.subr.mxu0 0.0
    %95 = vmatpush1.xpose.msra.mxu0 %v77
    %96 = vmatprep.subr.mxu0 0.0
    %97 = vmatpush1.xpose.msra.mxu0 %v74
    %98 = vmatprep.subr.mxu0 0.0
    %99 = vmatpush1.xpose.msra.mxu0 %v71
    %100 = vmatprep.subr.mxu0 0.0
    %101 = vmatpush1.xpose.msra.mxu0 %v68
    %102 = vmatprep.subr.mxu0 0.0
    %103 = vmatpush1.xpose.msra.mxu0 %v65
    %104 = vmatprep.subr.mxu0 0.0
    %105 = vmatpush1.xpose.msra.mxu0 %v62
    %106 = vmatprep.subr.mxu0 0.0
    %107 = vmatpush1.xpose.msra.mxu0 %v59
    %108 = vmatprep.subr.mxu0 0.0
    %109 = vmatpush1.xpose.msra.mxu0 %v56
    %110 = vmatprep.subr.mxu0 0.0
    %111 = vmatpush1.xpose.msra.mxu0 %v53
    %112 = vmatprep.subr.mxu0 0.0
    %113 = vmatpush1.xpose.msra.mxu0 %v50
    %114 = vmatprep.subr.mxu0 0.0
    %115 = vmatpush1.xpose.msra.mxu0 %v47
    %116 = vmatprep.subr.mxu0 0.0
    %117 = vmatpush1.xpose.msra.mxu0 %v44
    %118 = vmatprep.subr.mxu0 0.0
    %119 = vmatpush1.xpose.msra.mxu0 %v41
    %120 = vmatprep.subr.mxu0 0.0
    %121 = vmatpush2.xpose.msra.mxu0 0.0
    %122 = vmatprep.subr.mxu0 0.0
    %123 = vmatpush2.xpose.msra.mxu0 0.0
    %124 = vmatprep.subr.mxu0 0.0
    %125 = vmatpush2.xpose.msra.mxu0 0.0
    %126 = vmatprep.subr.mxu0 0.0
    %127 = vmatpush2.xpose.msra.mxu0 0.0
    %128 = vmatprep.subr.mxu0 0.0
    %129 = vmatpush2.xpose.msra.mxu0 0.0
    %130 = vmatprep.subr.mxu0 0.0
    %131 = vmatpush2.xpose.msra.mxu0 0.0
    %132 = vmatprep.subr.mxu0 0.0
    %133 = vmatpush2.xpose.msra.mxu0 0.0
    %134 = vmatprep.subr.mxu0 0.0
    %135 = vmatpush2.xpose.msra.mxu0 0.0
    %136 = vmatprep.subr.mxu0 0.0
    %137 = vmatpush2.xpose.msra.mxu0 0.0
    %138 = vmatprep.subr.mxu0 0.0
    %139 = vmatpush2.xpose.msra.mxu0 0.0
    %140 = vmatprep.subr.mxu0 0.0
    %141 = vmatpush2.xpose.msra.mxu0 0.0
    %142 = vmatprep.subr.mxu0 0.0
    %143 = vmatpush2.xpose.msra.mxu0 0.0
    %144 = vmatprep.subr.mxu0 0.0
    %145 = vmatpush2.xpose.msra.mxu0 0.0
    %146 = vmatprep.subr.mxu0 0.0
    %147 = vmatpush2.xpose.msra.mxu0 0.0
    %148 = vmatprep.subr.mxu0 0.0
    %149 = vmatpush2.xpose.msra.mxu0 0.0
    %150 = vmatprep.subr.mxu0 0.0
    %151 = vmatpush2.xpose.msra.mxu0 0.0
    %152 = vmatprep.mubr.f32.mxu0 0.0
    %153 = vmatmul.mubr.f32.gmra.mxu0 %v35
    %v154 = vpop.f32.mrf.mxu0
    %v155 = vadd.f32 0.0, %v154
    %v156 = vpop.f32.mrf.mxu0
    %157 = vmatprep.mubr.f32.mxu0 0.0
    %158 = vmatmul.mubr.f32.gmra.mxu0 %v38
    %v159 = vpop.f32.mrf.mxu0
    %v160 = vadd.f32 0.0, %v159
    %v161 = vpop.f32.mrf.mxu0
    %162 = vdwg.mxu0
    %p163 = scmp.eq.s32.totalorder 0, 0
    // Predicated region
    $region14: #{tpu_custom_call.1} parent=1 // pred_check
      %p164 = pneg %p163
    $region15: #{tpu_custom_call.1} parent=1 // pred_check_branch
      %166 = sbr.rel (%p164) target = $region17
    $region16: #{tpu_custom_call.1} parent=1 // pred_region
      %167 = vst [vmem:[#allocation2] sm:$0xff] %v155
      %168 = vst [vmem:[#allocation2 + $0x8] sm:$0xff] %v160
    $region17: #{tpu_custom_call.1} parent=1 // pred_fallthru
      _
    %p169 = scmp.gt.s32.totalorder 0, 0
    // Predicated region
    $region18: #{tpu_custom_call.1} parent=1 // pred_check
      %p170 = pneg %p169
    $region19: #{tpu_custom_call.1} parent=1 // pred_check_branch
      %172 = sbr.rel (%p170) target = $region21
    $region20: #{tpu_custom_call.1} parent=1 // pred_region
      %v173 = vld [vmem:[#allocation2] sm:$0xff]
      %v174 = vld [vmem:[#allocation2 + $0x8] sm:$0xff]
      %v175 = vadd.f32 %v173, %v155
      %v176 = vadd.f32 %v174, %v160
      %177 = vst [vmem:[#allocation2] sm:$0xff] %v175
      %178 = vst [vmem:[#allocation2 + $0x8] sm:$0xff] %v176
    $region21: #{tpu_custom_call.1} parent=1 // pred_fallthru
      _
    // Predicated region
    $region22: #{tpu_custom_call.1} parent=1 // pred_check
      %p179 = pneg %p163
    $region23: #{tpu_custom_call.1} parent=1 // pred_check_branch
      %181 = sbr.rel (%p179) target = $region25
    $region24: #{tpu_custom_call.1} parent=1 // pred_region
      %v182 = vld [vmem:[#allocation2] sm:$0xff]
      %v183 = vld [vmem:[#allocation2 + $0x8] sm:$0xff]
      %v184 = vld [vmem:[%s2] sm:$0x1]
      %v186 = vlaneseq
      %v187 = vshrl.u32 %v186, 7
      %v188 = vsub.s32 0, %v187
      %v189 = vrot.slane %v184, %v188
      %v191 = vadd.f32 %v182, %v189
      %v192 = vadd.f32 %v183, %v189
      %193 = vst [vmem:[#allocation2] sm:$0xff] %v191
      %194 = vst [vmem:[#allocation2 + $0x8] sm:$0xff] %v192
    $region25: #{tpu_custom_call.1} parent=1 // pred_fallthru
      _
    // Predicated region
    $region26: #{tpu_custom_call.1} parent=1 // pred_check
      _
    $region27: #{tpu_custom_call.1} parent=1 // pred_check_branch
      %196 = sbr.rel (0) target = $region29
    $region28: #{tpu_custom_call.1} parent=1 // pred_region
      %s198 = ssub.s32 256, 256
      %199 = vsyncadd [#allocation3], %s198
      %s200 = sshll.u32 [#allocation2], 4
      %s201 = int_to_ptr.vmem [resolvable:$true] %s200
      %206 = dma.vmem_to_hbm [thread:$0]  %s201, 256, %s3, [#allocation3], 128, 128, 8
    $region29: #{tpu_custom_call.1} parent=1 // pred_fallthru
      _
    // Predicated region
    $region30: #{tpu_custom_call.1} parent=1 // pred_check
      _
    $region31: #{tpu_custom_call.1} parent=1 // pred_check_branch
      %208 = sbr.rel (0) target = $region33
    $region32: #{tpu_custom_call.1} parent=1 // pred_region
      %209 = dma.done [#allocation3], 256
    $region33: #{tpu_custom_call.1} parent=1 // pred_fallthru
      _
    %210 = vsyncpa [#allocation3], 1

</llo_original>
